<compile_context>
chip_gen: v6e
topology: v6e:2x2x1
jax: 0.10.0
libtpu: 0.0.40
codegen_flags: <defaults>
</compile_context>

<pallas_src>
import functools

import jax
import jax.numpy as jnp
from jax.experimental import pallas as pl
from jax.experimental.pallas import tpu as pltpu


def _round_up(x: int, m: int) -> int:
    return ((x + m - 1) // m) * m


def _vmem_cap_bytes() -> int:
    """Per-core VMEM capacity with ~25% headroom for compiler scratch/semaphores."""
    try:
        cap = int(pltpu.get_tpu_info().vmem_capacity_bytes)
    except Exception:  # pragma: no cover - conservative fallback
        cap = 128 * 1024 * 1024
    return (cap * 3) // 4


def prepare_fused_params(w_common, b_common, w_variance, b_variance,
                         *, compute_dtype=jnp.bfloat16):
    """Fuse + lane-pad the two projections ONCE (hoisted out of the forward path).

    Args (PyTorch nn.Linear params, stored transposed):
      w_* : (F, C), b_* : (1, C) or (C,)
    Returns:
      w_fused : (F, 2*Cp) compute_dtype — halves [0:Cp) / [Cp:2Cp) are the common /
                variance weights, each zero-padded to Cp = round_up(C, 128) lanes.
      b_fused : (1, 2*Cp) float32
      C, Cp   : logical / padded common_dim (Python ints)
    """
    F, C = w_common.shape
    Cp = _round_up(C, 128)
    pad_c = Cp - C
    wc = jnp.pad(w_common, ((0, 0), (0, pad_c)))
    wv = jnp.pad(w_variance, ((0, 0), (0, pad_c)))
    w_fused = jnp.concatenate([wc, wv], axis=1).astype(compute_dtype)

    bc = jnp.pad(b_common.reshape(1, C), ((0, 0), (0, pad_c)))
    bv = jnp.pad(b_variance.reshape(1, C), ((0, 0), (0, pad_c)))
    b_fused = jnp.concatenate([bc, bv], axis=1).astype(jnp.float32)
    return w_fused, b_fused, C, Cp


# ----------------------------------------------------------------------------
# Kernels
# ----------------------------------------------------------------------------
def _resident_kernel(x_ref, w_ref, b_ref, ec_ref, v_ref):
    """Fast path: whole fused weight resident in VMEM, 1-D grid over batch tiles."""
    cp = ec_ref.shape[-1]
    y = jnp.dot(x_ref[...], w_ref[...], preferred_element_type=jnp.float32)
    y = y + b_ref[...]                       # bias kept in f32
    # Cp is a multiple of 128 -> both slices sit on clean vreg/lane boundaries.
    ec_ref[...] = y[:, :cp].astype(ec_ref.dtype)
    v_ref[...] = y[:, cp:].astype(v_ref.dtype)


def _tiled_kernel(x_ref, w_ref, b_ref, y_ref, acc_ref):
    """Fallback: (M, N, K) grid with an f32 accumulator over the K axis."""
    k = pl.program_id(2)

    @pl.when(k == 0)
    def _():
        # Initialize the accumulator with the broadcast bias (free epilogue add).
        acc_ref[...] = jnp.broadcast_to(b_ref[...], acc_ref.shape)

    acc_ref[...] += jnp.dot(x_ref[...], w_ref[...],
                            preferred_element_type=jnp.float32)

    @pl.when(k == pl.num_programs(2) - 1)
    def _():
        y_ref[...] = acc_ref[...].astype(y_ref.dtype)


# ----------------------------------------------------------------------------
# Wrapper
# ----------------------------------------------------------------------------
@functools.partial(
    jax.jit,
    static_argnames=("common_dim", "tm_max", "tn_max", "tk_max", "compute_dtype"))
def feature_decomposer(x, w_fused, b_fused, *, common_dim,
                       tm_max: int = 512, tn_max: int = 512, tk_max: int = 1024,
                       compute_dtype=jnp.bfloat16):
    """x: (..., F); (w_fused, b_fused) from prepare_fused_params -> (E_c, V), each (..., C)."""
    out_dtype = x.dtype
    lead = x.shape[:-1]
    F = x.shape[-1]
    x2 = x.reshape(-1, F)
    B = x2.shape[0]

    Np = w_fused.shape[1]
    Cp = Np // 2
    C = common_dim

    itemx = jnp.dtype(compute_dtype).itemsize
    itemo = jnp.dtype(out_dtype).itemsize
    vmem_cap = _vmem_cap_bytes()

    # bf16 compute: halves x HBM/VMEM traffic and hits MXU native throughput.
    xc = x2.astype(compute_dtype)

    # --- batch tile: multiple of 8 (or the full dim), avoid padding when aligned,
    #     and try to give v7x's two TensorCores >= 2 programs. -------------------
    def pick_tm(cap):
        if B <= cap:
            if B % 8 == 0 and B >= 16:
                half = _round_up(B // 2, 8)
                if B % half == 0:          # split only if it does not force padding
                    return half
            return B                       # full-dim block: no batch padding needed
        return max(8, (cap // 8) * 8)

    tm = pick_tm(tm_max)
    Mp = _round_up(B, tm)

    # --- fast path eligibility: whole fused weight resident in VMEM -------------
    w_bytes = F * Np * itemx
    fast_ws = (2 * tm * F * itemx          # double-buffered x tiles
               + 2 * w_bytes               # weight buffers (DMA'd once, resident)
               + 2 * Np * 4                # bias
               + 2 * 2 * tm * Cp * itemo)  # two double-buffered output tiles
    use_fast = fast_ws <= int(0.9 * vmem_cap)

    if use_fast:
        xp = xc if Mp == B else jnp.pad(xc, ((0, Mp - B), (0, 0)))
        grid = (Mp // tm,)
        vmem_limit = int(min(vmem_cap, max(16 * 1024 * 1024, 2 * fast_ws)))
        cost = pl.CostEstimate(
            flops=2 * Mp * Np * F,
            transcendentals=0,
            bytes_accessed=Mp * F * itemx + F * Np * itemx + Np * 4
                           + 2 * Mp * Cp * itemo)

        e_c, v = pl.pallas_call(
            _resident_kernel,
            out_shape=(jax.ShapeDtypeStruct((Mp, Cp), out_dtype),
                       jax.ShapeDtypeStruct((Mp, Cp), out_dtype)),
            grid=grid,
            in_specs=[
                pl.BlockSpec((tm, F), lambda i: (i, 0)),
                # Constant index_maps: weight/bias fetched once and kept resident.
                pl.BlockSpec((F, Np), lambda i: (0, 0)),
                pl.BlockSpec((1, Np), lambda i: (0, 0)),
            ],
            out_specs=(pl.BlockSpec((tm, Cp), lambda i: (i, 0)),
                       pl.BlockSpec((tm, Cp), lambda i: (i, 0))),
            compiler_params=pltpu.CompilerParams(
                dimension_semantics=("parallel",),
                vmem_limit_bytes=vmem_limit),
            cost_estimate=cost,
        )(xp, w_fused, b_fused)

        e_c = e_c[:B, :C]
        v = v[:B, :C]
    else:
        # --- tiled fallback for weights that do not fit VMEM --------------------
        tk = max(128, (min(tk_max, _round_up(F, 128)) // 128) * 128)
        Kp = _round_up(F, tk)
        tn = max(128, (min(tn_max, Np) // 128) * 128)
        while Np % tn != 0:                # Np is a multiple of 128, so this terminates
            tn -= 128

        xp = xc if (Mp == B and Kp == F) else jnp.pad(
            xc, ((0, Mp - B), (0, Kp - F)))
        wp = w_fused if Kp == F else jnp.pad(w_fused, ((0, Kp - F), (0, 0)))

        grid = (Mp // tm, Np // tn, Kp // tk)
        ws = (2 * (tm * tk + tk * tn) * itemx + 2 * tn * 4
              + 2 * tm * tn * itemo + tm * tn * 4)
        vmem_limit = int(min(vmem_cap, max(32 * 1024 * 1024, 4 * ws)))
        cost = pl.CostEstimate(
            flops=2 * Mp * Np * Kp,
            transcendentals=0,
            # account for x / W revisit traffic across the j / i grid axes
            bytes_accessed=Mp * Kp * itemx * (Np // tn)
                           + Kp * Np * itemx * (Mp // tm)
                           + Np * 4 + Mp * Np * itemo)

        y = pl.pallas_call(
            _tiled_kernel,
            out_shape=jax.ShapeDtypeStruct((Mp, Np), out_dtype),
            grid=grid,
            in_specs=[
                pl.BlockSpec((tm, tk), lambda i, j, k: (i, k)),
                pl.BlockSpec((tk, tn), lambda i, j, k: (k, j)),
                pl.BlockSpec((1, tn), lambda i, j, k: (0, j)),
            ],
            out_specs=pl.BlockSpec((tm, tn), lambda i, j, k: (i, j)),
            scratch_shapes=[pltpu.VMEM((tm, tn), jnp.float32)],
            compiler_params=pltpu.CompilerParams(
                dimension_semantics=("parallel", "parallel", "arbitrary"),
                vmem_limit_bytes=vmem_limit),
            cost_estimate=cost,
        )(xp, wp, b_fused)

        # Each half starts at a 128-aligned lane offset (0 and Cp).
        e_c = y[:B, :C]
        v = y[:B, Cp:Cp + C]

    return e_c.reshape(lead + (C,)), v.reshape(lead + (C,))


if __name__ == "__main__":
    batch = 8
    feature_dim = 32
    common_dim = 16

    key = jax.random.PRNGKey(0)
    kx, kwc, kbc, kwv, kbv = jax.random.split(key, 5)

    # PyTorch nn.Linear params (weight (C, F), bias (C,)) stored transposed as (F, C).
    x = jax.random.normal(kx, (batch, feature_dim), dtype=jnp.float32)
    w_common = jax.random.normal(kwc, (feature_dim, common_dim), jnp.float32) * 0.1
    b_common = jax.random.normal(kbc, (1, common_dim), jnp.float32) * 0.1
    w_variance = jax.random.normal(kwv, (feature_dim, common_dim), jnp.float32) * 0.1
    b_variance = jax.random.normal(kbv, (1, common_dim), jnp.float32) * 0.1

    # Fuse / pad / cast the parameters ONCE (module init), not per forward call.
    w_fused, b_fused, C, Cp = prepare_fused_params(
        w_common, b_common, w_variance, b_variance, compute_dtype=jnp.bfloat16)

    e_c, v = feature_decomposer(x, w_fused, b_fused, common_dim=C)
    jax.block_until_ready((e_c, v))

    # Reference with the same bf16 input/weight rounding (accumulation in f32);
    # matches the kernel's math (PyTorch Linear semantics modulo the bf16 cast).
    xr = x.astype(jnp.bfloat16).astype(jnp.float32)
    wcr = w_common.astype(jnp.bfloat16).astype(jnp.float32)
    wvr = w_variance.astype(jnp.bfloat16).astype(jnp.float32)
    e_c_ref = xr @ wcr + b_common
    v_ref = xr @ wvr + b_variance

    assert e_c.shape == (batch, common_dim) and v.shape == (batch, common_dim)
    assert jnp.allclose(e_c, e_c_ref, atol=2e-3, rtol=2e-3), "E_c mismatch"
    assert jnp.allclose(v, v_ref, atol=2e-3, rtol=2e-3), "V mismatch"

    print("KERNEL_OK")
</pallas_src>

<mosaic_0001>
module attributes {stable_mosaic.version = 11 : i64} {
  func.func @_resident_kernel(%arg0: i32, %arg1: memref<8x32xbf16, #tpu.memory_space<vmem>>, %arg2: memref<32x256xbf16, #tpu.memory_space<vmem>>, %arg3: memref<1x256xf32, #tpu.memory_space<vmem>>, %arg4: memref<8x128xf32, #tpu.memory_space<vmem>>, %arg5: memref<8x128xf32, #tpu.memory_space<vmem>>) attributes {dimension_semantics = [#tpu.dimension_semantics<parallel>], iteration_bounds = array<i64: 1>, scalar_prefetch = 0 : i64, scratch_operands = 0 : i64, tpu.core_type = #tpu.core_type<tc>, window_params = [{transform_indices = @transform_0, window_bounds = array<i64: 8, 32>}, {pipeline_mode = #tpu.pipeline_mode<synchronous>, transform_indices = @transform_1, window_bounds = array<i64: 32, 256>}, {pipeline_mode = #tpu.pipeline_mode<synchronous>, transform_indices = @transform_2, window_bounds = array<i64: 1, 256>}, {transform_indices = @transform_3, window_bounds = array<i64: 8, 128>}, {transform_indices = @transform_4, window_bounds = array<i64: 8, 128>}]} {
    %c0 = arith.constant 0 : index
    %c0_0 = arith.constant 0 : index
    %0 = vector.load %arg1[%c0, %c0_0] : memref<8x32xbf16, #tpu.memory_space<vmem>>, vector<8x32xbf16>
    %c0_1 = arith.constant 0 : index
    %c0_2 = arith.constant 0 : index
    %1 = vector.load %arg2[%c0_1, %c0_2] : memref<32x256xbf16, #tpu.memory_space<vmem>>, vector<32x256xbf16>
    %cst = arith.constant dense<0.000000e+00> : vector<8x256xf32>
    %2 = tpu.matmul %0, %1, %cst {dimension_numbers = #tpu.dot_dimension_numbers<[1], [0], [0], [1], [0, 0, 1, 1], [], []>} : vector<8x32xbf16>, vector<32x256xbf16>, vector<8x256xf32> -> vector<8x256xf32>
    %c0_3 = arith.constant 0 : index
    %c0_4 = arith.constant 0 : index
    %3 = vector.load %arg3[%c0_3, %c0_4] : memref<1x256xf32, #tpu.memory_space<vmem>>, vector<1x256xf32>
    %4 = vector.broadcast %3 : vector<1x256xf32> to vector<8x256xf32>
    %5 = arith.addf %2, %4 : vector<8x256xf32>
    %6 = vector.extract_strided_slice %5 {offsets = [0, 0], sizes = [8, 128], strides = [1, 1]} : vector<8x256xf32> to vector<8x128xf32>
    %c0_5 = arith.constant 0 : index
    %c0_6 = arith.constant 0 : index
    %7 = vector.load %arg4[%c0_5, %c0_6] : memref<8x128xf32, #tpu.memory_space<vmem>>, vector<8x128xf32>
    tpu.vector_store %arg4[%c0_5, %c0_6], %6 {strides = array<i32>} : memref<8x128xf32, #tpu.memory_space<vmem>>, vector<8x128xf32>,
    %8 = vector.extract_strided_slice %5 {offsets = [0, 128], sizes = [8, 128], strides = [1, 1]} : vector<8x256xf32> to vector<8x128xf32>
    %c0_7 = arith.constant 0 : index
    %c0_8 = arith.constant 0 : index
    %9 = vector.load %arg5[%c0_7, %c0_8] : memref<8x128xf32, #tpu.memory_space<vmem>>, vector<8x128xf32>
    tpu.vector_store %arg5[%c0_7, %c0_8], %8 {strides = array<i32>} : memref<8x128xf32, #tpu.memory_space<vmem>>, vector<8x128xf32>,
    return
  }
  func.func @transform_0(%arg0: i32) -> (i32, i32) {
    %c0_i32 = arith.constant 0 : i32
    %c0_i32_0 = arith.constant 0 : i32
    return %arg0, %c0_i32 : i32, i32
  }
  func.func @transform_1(%arg0: i32) -> (i32, i32) {
    %c0_i32 = arith.constant 0 : i32
    %c0_i32_0 = arith.constant 0 : i32
    %c0_i32_1 = arith.constant 0 : i32
    return %c0_i32, %c0_i32_0 : i32, i32
  }
  func.func @transform_2(%arg0: i32) -> (i32, i32) {
    %c0_i32 = arith.constant 0 : i32
    %c0_i32_0 = arith.constant 0 : i32
    %c0_i32_1 = arith.constant 0 : i32
    return %c0_i32, %c0_i32_0 : i32, i32
  }
  func.func @transform_3(%arg0: i32) -> (i32, i32) {
    %c0_i32 = arith.constant 0 : i32
    %c0_i32_0 = arith.constant 0 : i32
    return %arg0, %c0_i32 : i32, i32
  }
  func.func @transform_4(%arg0: i32) -> (i32, i32) {
    %c0_i32 = arith.constant 0 : i32
    %c0_i32_0 = arith.constant 0 : i32
    return %arg0, %c0_i32 : i32, i32
  }
}

</mosaic_0001>

<llo_original>
// kernel: feature_decomposer.1
$region0: #{feature_decomposer.1}
  #allocation0 [shape = 'u32[]', space=smem, size = 0x4, offset = 0x4, fixed_abs, tag = 'smem constant byte address 0x4 - core index']
  #allocation1 [shape = 'u32[144,128]{1,0:T(1,128)}', space=vmem, size = 0x12000, scoped, tag = 'internal scratch']
  %s0 = inlined_call_operand.vmem [shape: bf16[8,32], index: 0, kind: input, shape index: {}]
  %s1 = inlined_call_operand.hbm [shape: bf16[32,256], index: 1, kind: input, shape index: {}]
  %s2 = inlined_call_operand.vmem [shape: f32[1,256], index: 2, kind: input, shape index: {}]
  %s3 = inlined_call_operand.hbm [shape: f32[8,128], index: 3, kind: output, shape index: {0}]
  %s4 = inlined_call_operand.hbm [shape: f32[8,128], index: 4, kind: output, shape index: {1}]
  %5 = xla_tuple %s3, %s4
  %s6 = sld [smem:[#allocation0]]
  $region34: #{feature_decomposer.1} parent=0
    _
  %s8 = ssub.s32 1, %s6
  %s9 = scalar_select 0, %s8, %s6
  $region1: #{feature_decomposer.1} parent=0
    #allocation2 [shape = 'u8[16384]{0}', space=vmem, size = 0x4000, scoped, tag = 'input window, operand 1, single buffered']
    #allocation3 [shape = 's32[1]{0}', space=sflag, size = 0x4, scoped, tag = 'scoped memory for feature_decomposer.1']
    #allocation4 [shape = 's32[1]{0}', space=sflag, size = 0x4, scoped, tag = 'scoped memory for feature_decomposer.1']
    #allocation5 [shape = 'u8[4096]{0}', space=vmem, size = 0x1000, scoped, tag = 'output window, operand 0, single buffered']
    #allocation6 [shape = 'u8[4096]{0}', space=vmem, size = 0x1000, scoped, tag = 'output window, operand 1, single buffered']
    #allocation7 [shape = 's32[1]{0}', space=sflag, size = 0x4, scoped, tag = 'scoped memory for feature_decomposer.1']
    %10 = vsyncpa [#allocation3], 0
    %11 = vsyncpa [#allocation4], 0
    %12 = vsyncpa [#allocation7], 0
    // Predicated region
    $region2: #{feature_decomposer.1} parent=1 // pred_check
      _
    $region3: #{feature_decomposer.1} parent=1 // pred_check_branch
      %14 = sbr.rel (0) target = $region5
    $region4: #{feature_decomposer.1} parent=1 // pred_region
      _
    $region5: #{feature_decomposer.1} parent=1 // pred_fallthru
      _
    // Predicated region
    $region6: #{feature_decomposer.1} parent=1 // pred_check
      _
    $region7: #{feature_decomposer.1} parent=1 // pred_check_branch
      %16 = sbr.rel (0) target = $region9
    $region8: #{feature_decomposer.1} parent=1 // pred_region
      %s18 = ssub.s32 512, 512
      %19 = vsyncadd [#allocation3], %s18
      %s20 = sshll.u32 [#allocation2], 4
      %s21 = int_to_ptr.vmem [resolvable:$true] %s20
      %26 = dma.hbm_to_vmem [thread:$0]  %s1, 512, %s21, [#allocation3], 128, 128, 8
    $region9: #{feature_decomposer.1} parent=1 // pred_fallthru
      _
    // Predicated region
    $region10: #{feature_decomposer.1} parent=1 // pred_check
      _
    $region11: #{feature_decomposer.1} parent=1 // pred_check_branch
      %28 = sbr.rel (0) target = $region13
    $region12: #{feature_decomposer.1} parent=1 // pred_region
      _
    $region13: #{feature_decomposer.1} parent=1 // pred_fallthru
      _
    // Predicated region
    $region14: #{feature_decomposer.1} parent=1 // pred_check
      _
    $region15: #{feature_decomposer.1} parent=1 // pred_check_branch
      %30 = sbr.rel (0) target = $region17
    $region16: #{feature_decomposer.1} parent=1 // pred_region
      %31 = dma.done [#allocation3], 512
    $region17: #{feature_decomposer.1} parent=1 // pred_fallthru
      _
    %v33 = vld [vmem:[%s0] sm:$0xf]
    %v34 = vld [vmem:[#allocation2] sm:$0xff]
    %v35 = vld [vmem:[#allocation2 + $0x8] sm:$0xff]
    %v36 = vld [vmem:[#allocation2 + $0x10] sm:$0xff]
    %v37 = vld [vmem:[#allocation2 + $0x18] sm:$0xff]
    %v38 = vld [vmem:[%s2] sm:$0x3]
    %v40 = vlaneseq
    %v41 = vshrl.u32 %v40, 7
    %v42 = vsub.s32 0, %v41
    %v43 = vrot.slane %v38, %v42
    %v44 = vlaneseq
    %v45 = vshrl.u32 %v44, 7
    %v46 = vsub.s32 1, %v45
    %v47 = vrot.slane %v38, %v46
    %v54 = vunpack.c.l.b16 %v34
    %v55 = vunpack.c.h.b16 %v34
    %v56 = vunpack.c.l.b16 %v35
    %v57 = vunpack.c.h.b16 %v35
    %v58 = vunpack.c.l.b16 %v36
    %v59 = vunpack.c.h.b16 %v36
    %v60 = vunpack.c.l.b16 %v37
    %v61 = vunpack.c.h.b16 %v37
    %v62 = vpack.c.b16 %v56, %v54
    %v63 = vpack.c.b16 %v57, %v55
    %v64 = vpack.c.b16 %v60, %v58
    %v65 = vpack.c.b16 %v61, %v59
    %vm70 = vcmask 261120
    %v72 = vsel %vm70, %v33, 0
    %74 = vmatprep.subr.bf16.mxu0 0
    %75 = vmatpush1.bf16.msra.mxu0 0
    %76 = vmatprep.subr.bf16.mxu0 0
    %77 = vmatpush1.bf16.msra.mxu0 0
    %78 = vmatprep.subr.bf16.mxu0 0
    %79 = vmatpush1.bf16.msra.mxu0 0
    %80 = vmatprep.subr.bf16.mxu0 0
    %81 = vmatpush1.bf16.msra.mxu0 0
    %82 = vmatprep.subr.bf16.mxu0 0
    %83 = vmatpush1.bf16.msra.mxu0 0
    %84 = vmatprep.subr.bf16.mxu0 0
    %85 = vmatpush1.bf16.msra.mxu0 0
    %86 = vmatprep.subr.bf16.mxu0 %v65
    %87 = vmatpush1.bf16.msra.mxu0 %v64
    %88 = vmatprep.subr.bf16.mxu0 %v63
    %89 = vmatpush1.bf16.msra.mxu0 %v62
    %90 = vmatprep.subr.bf16.mxu0 0
    %91 = vmatpush2.bf16.msra.mxu0 0
    %92 = vmatprep.subr.bf16.mxu0 0
    %93 = vmatpush2.bf16.msra.mxu0 0
    %94 = vmatprep.subr.bf16.mxu0 0
    %95 = vmatpush2.bf16.msra.mxu0 0
    %96 = vmatprep.subr.bf16.mxu0 0
    %97 = vmatpush2.bf16.msra.mxu0 0
    %98 = vmatprep.subr.bf16.mxu0 0
    %99 = vmatpush2.bf16.msra.mxu0 0
    %100 = vmatprep.subr.bf16.mxu0 0
    %101 = vmatpush2.bf16.msra.mxu0 0
    %102 = vmatprep.subr.bf16.mxu0 0
    %103 = vmatpush2.bf16.msra.mxu0 0
    %104 = vmatprep.subr.bf16.mxu0 0
    %105 = vmatpush2.bf16.msra.mxu0 0
    %106 = vmatprep.mubr.bf16.mxu0 0
    %107 = vmatmul.mubr.bf16.gmra.mxu0 %v72
    %v108 = vpop.f32.mrf.mxu0
    %v109 = vadd.f32 %v43, %v108
    %v110 = vpop.f32.mrf.mxu0
    %v111 = vadd.f32 %v47, %v110
    %v112 = vpop.f32.mrf.mxu0
    %v113 = vpop.f32.mrf.mxu0
    %114 = vdwg.mxu0
    %115 = vst [vmem:[#allocation5] sm:$0xff] %v109
    %116 = vst [vmem:[#allocation6] sm:$0xff] %v111
    // Predicated region
    $region18: #{feature_decomposer.1} parent=1 // pred_check
      _
    $region19: #{feature_decomposer.1} parent=1 // pred_check_branch
      %118 = sbr.rel (0) target = $region21
    $region20: #{feature_decomposer.1} parent=1 // pred_region
      %s120 = ssub.s32 128, 128
      %121 = vsyncadd [#allocation4], %s120
      %s123 = sshll.u32 [#allocation5], 4
      %s124 = int_to_ptr.vmem [resolvable:$true] %s123
      %126 = dma.vmem_to_hbm [thread:$0]  %s124, 128, %s3, [#allocation4]
    $region21: #{feature_decomposer.1} parent=1 // pred_fallthru
      _
    // Predicated region
    $region22: #{feature_decomposer.1} parent=1 // pred_check
      _
    $region23: #{feature_decomposer.1} parent=1 // pred_check_branch
      %128 = sbr.rel (0) target = $region25
    $region24: #{feature_decomposer.1} parent=1 // pred_region
      %s130 = ssub.s32 128, 128
      %131 = vsyncadd [#allocation7], %s130
      %s133 = sshll.u32 [#allocation6], 4
      %s134 = int_to_ptr.vmem [resolvable:$true] %s133
      %136 = dma.vmem_to_hbm [thread:$0]  %s134, 128, %s4, [#allocation7]
    $region25: #{feature_decomposer.1} parent=1 // pred_fallthru
      _
    // Predicated region
    $region26: #{feature_decomposer.1} parent=1 // pred_check
      _
    $region27: #{feature_decomposer.1} parent=1 // pred_check_branch
      %138 = sbr.rel (0) target = $region29
    $region28: #{feature_decomposer.1} parent=1 // pred_region
      %139 = dma.done [#allocation4], 128
    $region29: #{feature_decomposer.1} parent=1 // pred_fallthru
      _
    // Predicated region
    $region30: #{feature_decomposer.1} parent=1 // pred_check
      _
    $region31: #{feature_decomposer.1} parent=1 // pred_check_branch
      %141 = sbr.rel (0) target = $region33
    $region32: #{feature_decomposer.1} parent=1 // pred_region
      %142 = dma.done [#allocation7], 128
    $region33: #{feature_decomposer.1} parent=1 // pred_fallthru
      _
    %143 = vsyncpa [#allocation3], 1
    %144 = vsyncpa [#allocation4], 1
    %145 = vsyncpa [#allocation7], 1

</llo_original>
